<compile_context>
chip_gen: v7x
topology: tpu7x:2x2x1
jax: 0.10.0
libtpu: 0.0.40
codegen_flags: <defaults>
</compile_context>

<pallas_src>
import functools

import jax
import jax.numpy as jnp
from jax import lax
from jax.experimental import pallas as pl
from jax.experimental.pallas import tpu as pltpu


def _kl_loss_kernel(scale_ref, q_ref, k_ref, o_ref):
    # scale_ref : (1,) SMEM      holds -0.5 / sigma**2
    # q_ref     : (rows, C)      fused query rows for this grid step (TN*L)
    # k_ref     : (M, C)         memory items
    # o_ref     : (1, 1, rows)   symmetric KL per fused row (lane-dense store)
    M = k_ref.shape[0]
    rows = q_ref.shape[0]

    # Logits in (M, rows) layout: s[m, r] = sum_c items[m, c] * q[r, c].
    s = lax.dot_general(k_ref[...], q_ref[...], (((1,), (1,)), ((), ())),
                        preferred_element_type=jnp.float32)         # (M, rows)

    # ---- log-softmax over the memory (sublane) axis ----------------------
    s_max = jnp.max(s, axis=0, keepdims=True)                       # (1, rows)
    shifted = s - s_max                                             # (M, rows)
    e = jnp.exp(shifted)                                            # (M, rows)
    sum_e = jnp.sum(e, axis=0, keepdims=True)                       # (1, rows)
    score = e * pl.reciprocal(sum_e, approx=False)                  # (M, rows)
    log_score = shifted - jnp.log(sum_e)                            # (M, rows)

    # ---- Gaussian prior centered at the (first) argmax slot --------------
    iota = lax.broadcasted_iota(jnp.int32, (M, rows), 0).astype(jnp.float32)
    center = jnp.min(jnp.where(s >= s_max, iota, jnp.float32(M)),
                     axis=0, keepdims=True)                         # (1, rows)
    diff = iota - center
    g_logit = scale_ref[0] * (diff * diff)                          # (M, rows)
    g = jnp.exp(g_logit)
    sum_g = jnp.sum(g, axis=0, keepdims=True)                       # (1, rows)
    prior = g * pl.reciprocal(sum_g, approx=False)                  # (M, rows)
    log_prior = g_logit - jnp.log(sum_g)                            # (M, rows)

    # ---- symmetric KL:  sum_m (p - s) * (log p - log s) ------------------
    kl = jnp.sum((prior - score) * (log_prior - log_score),
                 axis=0, keepdims=True)                             # (1, rows)
    o_ref[0] = kl.astype(o_ref.dtype)


def _choose_batch_tile(n, seq_len, target_rows):
    """Largest TN dividing N aiming for TN*L >= target_rows, while keeping at
    least 2 grid steps when possible (so both v7x TensorCores get work)."""
    best = 1
    for tn in range(1, n + 1):
        if n % tn:
            continue
        if n > 1 and n // tn < 2:
            continue
        best = tn
        if tn * seq_len >= target_rows:
            break
    return best


@functools.partial(jax.jit, static_argnames=("reduce", "target_rows"))
def kl_loss_forward(queries, items, sigma, reduce=True, target_rows=256):
    """queries: (N, L, C) f32, items: (M, C) f32, sigma: scalar."""
    N, L, C = queries.shape
    M, _ = items.shape

    tn = _choose_batch_tile(N, L, target_rows)
    rows = tn * L
    num_blocks = N // tn

    q2 = queries.reshape(N * L, C).astype(jnp.float32)
    k2 = items.astype(jnp.float32)
    scale = (-0.5 / (jnp.asarray(sigma, jnp.float32) ** 2)).reshape((1,))

    # VMEM budget: double-buffered input/output blocks + live (M, rows) tiles.
    block_bytes = 4 * 2 * (rows * C + M * C + rows)
    live_bytes = 4 * 8 * M * rows
    vmem_limit = int(min(32 * 1024 * 1024,
                         max(4 * 1024 * 1024, 2 * (block_bytes + live_bytes))))

    out = pl.pallas_call(
        _kl_loss_kernel,
        out_shape=jax.ShapeDtypeStruct((num_blocks, 1, rows), jnp.float32),
        grid=(num_blocks,),
        in_specs=[
            pl.BlockSpec(memory_space=pltpu.MemorySpace.SMEM),   # -0.5/sigma^2
            pl.BlockSpec((rows, C), lambda b: (b, 0)),           # fused queries
            pl.BlockSpec((M, C), lambda b: (0, 0)),              # memory items
        ],
        out_specs=pl.BlockSpec((1, 1, rows), lambda b: (b, 0, 0)),
        compiler_params=pltpu.CompilerParams(
            dimension_semantics=("parallel",),
            vmem_limit_bytes=vmem_limit),
    )(scale, q2, k2)

    kld = out.reshape(N, L)                  # per-(n, l) symmetric KL
    if reduce:
        return jnp.mean(kld)
    return kld


def _reference(queries, items, sigma, reduce=True):
    # Pure-JAX reference mirroring the assumed PyTorch semantics.
    s = jnp.einsum("nlc,mc->nlm", queries, items)
    log_score = jax.nn.log_softmax(s, axis=-1)
    score = jnp.exp(log_score)
    M = items.shape[0]
    center = jnp.argmax(s, axis=-1, keepdims=True).astype(jnp.float32)
    iota = jnp.arange(M, dtype=jnp.float32)[None, None, :]
    g_logit = -0.5 * ((iota - center) / sigma) ** 2
    log_prior = jax.nn.log_softmax(g_logit, axis=-1)
    prior = jnp.exp(log_prior)
    kl = (jnp.sum(prior * (log_prior - log_score), axis=-1)
          + jnp.sum(score * (log_score - log_prior), axis=-1))
    return jnp.mean(kl) if reduce else kl


if __name__ == "__main__":
    key = jax.random.PRNGKey(0)
    kq, ki = jax.random.split(key)
    N, L, C, M = 2, 8, 32, 16          # queries: N x L x C, items: M x C
    queries = jax.random.normal(kq, (N, L, C), dtype=jnp.float32)
    items = jax.random.normal(ki, (M, C), dtype=jnp.float32)
    sigma = 1.0

    out = kl_loss_forward(queries, items, sigma, reduce=True)
    jax.block_until_ready(out)

    ref = _reference(queries, items, sigma, reduce=True)
    assert jnp.allclose(out, ref, rtol=5e-4, atol=1e-4), (out, ref)

    per_elem = kl_loss_forward(queries, items, sigma, reduce=False)
    jax.block_until_ready(per_elem)
    assert per_elem.shape == (N, L)
    assert bool(jnp.all(jnp.isfinite(per_elem)))

    print("KERNEL_OK")
</pallas_src>

<mosaic_0001>
module attributes {stable_mosaic.version = 11 : i64} {
  func.func @_kl_loss_kernel(%arg0: i32, %arg1: memref<1xf32, #tpu.memory_space<smem>>, %arg2: memref<8x32xf32, #tpu.memory_space<vmem>>, %arg3: memref<16x32xf32, #tpu.memory_space<vmem>>, %arg4: memref<1x1x8xf32, #tpu.memory_space<vmem>>) attributes {dimension_semantics = [#tpu.dimension_semantics<parallel>], iteration_bounds = array<i64: 2>, scalar_prefetch = 0 : i64, scratch_operands = 0 : i64, tpu.core_type = #tpu.core_type<tc>, window_params = [{transform_indices = @transform_0, window_bounds = array<i64: 1>}, {transform_indices = @transform_1, window_bounds = array<i64: 8, 32>}, {pipeline_mode = #tpu.pipeline_mode<synchronous>, transform_indices = @transform_2, window_bounds = array<i64: 16, 32>}, {transform_indices = @transform_3, window_bounds = array<i64: 1, 1, 8>}]} {
    %c0 = arith.constant 0 : index
    %c0_0 = arith.constant 0 : index
    %0 = vector.load %arg3[%c0, %c0_0] : memref<16x32xf32, #tpu.memory_space<vmem>>, vector<16x32xf32>
    %c0_1 = arith.constant 0 : index
    %c0_2 = arith.constant 0 : index
    %1 = vector.load %arg2[%c0_1, %c0_2] : memref<8x32xf32, #tpu.memory_space<vmem>>, vector<8x32xf32>
    %cst = arith.constant dense<0.000000e+00> : vector<16x8xf32>
    %2 = tpu.matmul %0, %1, %cst {dimension_numbers = #tpu.dot_dimension_numbers<[1], [1], [0], [0], [0, 0, 1, 0], [], []>} : vector<16x32xf32>, vector<8x32xf32>, vector<16x8xf32> -> vector<16x8xf32>
    %cst_3 = arith.constant dense<0xFF800000> : vector<8xf32>
    %3 = vector.multi_reduction <maximumf>, %2, %cst_3 [0] : vector<16x8xf32> to vector<8xf32>
    %4 = vector.shape_cast %3 : vector<8xf32> to vector<1x8xf32>
    %5 = vector.broadcast %4 : vector<1x8xf32> to vector<16x8xf32>
    %6 = arith.subf %2, %5 : vector<16x8xf32>
    %7 = math.exp %6 : vector<16x8xf32>
    %cst_4 = arith.constant dense<0.000000e+00> : vector<8xf32>
    %8 = vector.multi_reduction <add>, %7, %cst_4 [0] : vector<16x8xf32> to vector<8xf32>
    %9 = vector.shape_cast %8 : vector<8xf32> to vector<1x8xf32>
    %10 = tpu.reciprocal %9 : vector<1x8xf32> -> vector<1x8xf32>
    %11 = vector.broadcast %10 : vector<1x8xf32> to vector<16x8xf32>
    %12 = arith.mulf %7, %11 : vector<16x8xf32>
    %13 = math.log %9 : vector<1x8xf32>
    %14 = vector.broadcast %13 : vector<1x8xf32> to vector<16x8xf32>
    %15 = arith.subf %6, %14 : vector<16x8xf32>
    %16 = tpu.iota {dimensions = array<i32: 0>} : vector<16x8xi32>
    %17 = arith.sitofp %16 : vector<16x8xi32> to vector<16x8xf32>
    %18 = vector.broadcast %4 : vector<1x8xf32> to vector<16x8xf32>
    %19 = arith.cmpf oge, %2, %18 : vector<16x8xf32>
    %cst_5 = arith.constant 1.600000e+01 : f32
    %20 = vector.broadcast %cst_5 : f32 to vector<16x8xf32>
    %21 = arith.select %19, %17, %20 : vector<16x8xi1>, vector<16x8xf32>
    %cst_6 = arith.constant dense<0x7F800000> : vector<8xf32>
    %22 = vector.multi_reduction <minimumf>, %21, %cst_6 [0] : vector<16x8xf32> to vector<8xf32>
    %23 = vector.shape_cast %22 : vector<8xf32> to vector<1x8xf32>
    %24 = vector.broadcast %23 : vector<1x8xf32> to vector<16x8xf32>
    %25 = arith.subf %17, %24 : vector<16x8xf32>
    %c0_7 = arith.constant 0 : index
    %26 = memref.load %arg1[%c0_7] : memref<1xf32, #tpu.memory_space<smem>>
    %27 = arith.mulf %25, %25 : vector<16x8xf32>
    %28 = vector.broadcast %26 : f32 to vector<16x8xf32>
    %29 = arith.mulf %28, %27 : vector<16x8xf32>
    %30 = math.exp %29 : vector<16x8xf32>
    %cst_8 = arith.constant dense<0.000000e+00> : vector<8xf32>
    %31 = vector.multi_reduction <add>, %30, %cst_8 [0] : vector<16x8xf32> to vector<8xf32>
    %32 = vector.shape_cast %31 : vector<8xf32> to vector<1x8xf32>
    %33 = tpu.reciprocal %32 : vector<1x8xf32> -> vector<1x8xf32>
    %34 = vector.broadcast %33 : vector<1x8xf32> to vector<16x8xf32>
    %35 = arith.mulf %30, %34 : vector<16x8xf32>
    %36 = math.log %32 : vector<1x8xf32>
    %37 = vector.broadcast %36 : vector<1x8xf32> to vector<16x8xf32>
    %38 = arith.subf %29, %37 : vector<16x8xf32>
    %39 = arith.subf %35, %12 : vector<16x8xf32>
    %40 = arith.subf %38, %15 : vector<16x8xf32>
    %41 = arith.mulf %39, %40 : vector<16x8xf32>
    %cst_9 = arith.constant dense<0.000000e+00> : vector<8xf32>
    %42 = vector.multi_reduction <add>, %41, %cst_9 [0] : vector<16x8xf32> to vector<8xf32>
    %43 = vector.shape_cast %42 : vector<8xf32> to vector<1x8xf32>
    %c0_10 = arith.constant 0 : index
    %c0_11 = arith.constant 0 : index
    %c0_12 = arith.constant 0 : index
    %44 = vector.load %arg4[%c0_10, %c0_11, %c0_12] : memref<1x1x8xf32, #tpu.memory_space<vmem>>, vector<1x1x8xf32>
    %45 = vector.shape_cast %44 : vector<1x1x8xf32> to vector<1x8xf32>
    %46 = vector.shape_cast %43 : vector<1x8xf32> to vector<1x1x8xf32>
    tpu.vector_store %arg4[%c0_10, %c0_11, %c0_12], %46 {strides = array<i32>} : memref<1x1x8xf32, #tpu.memory_space<vmem>>, vector<1x1x8xf32>,
    return
  }
  func.func @transform_0(%arg0: i32) -> i32 {
    %c0_i32 = arith.constant 0 : i32
    %c0_i32_0 = arith.constant 0 : i32
    return %c0_i32 : i32
  }
  func.func @transform_1(%arg0: i32) -> (i32, i32) {
    %c0_i32 = arith.constant 0 : i32
    %c0_i32_0 = arith.constant 0 : i32
    return %arg0, %c0_i32 : i32, i32
  }
  func.func @transform_2(%arg0: i32) -> (i32, i32) {
    %c0_i32 = arith.constant 0 : i32
    %c0_i32_0 = arith.constant 0 : i32
    %c0_i32_1 = arith.constant 0 : i32
    return %c0_i32, %c0_i32_0 : i32, i32
  }
  func.func @transform_3(%arg0: i32) -> (i32, i32, i32) {
    %c0_i32 = arith.constant 0 : i32
    %c0_i32_0 = arith.constant 0 : i32
    %c0_i32_1 = arith.constant 0 : i32
    return %arg0, %c0_i32, %c0_i32_0 : i32, i32, i32
  }
}

</mosaic_0001>

<llo_original>
// kernel: kl_loss_forward.1
$region0: #{kl_loss_forward.1}
  #allocation0 [shape = 'u32[]', space=smem, size = 0x4, offset = 0x4, fixed_abs, tag = 'smem constant byte address 0x4 - core index']
  #allocation1 [shape = 'u32[144,128]{1,0:T(1,128)}', space=vmem, size = 0x12000, scoped, tag = 'internal scratch']
  #allocation2 [shape = 'f32[1]{0:T(128)S(6)}', space=smem, size = 0x200, scoped, tag = 'scoped memory for kl_loss_forward.1']
  %s0 = inlined_call_operand.<no memory space> [shape: f32[1], index: 0, kind: input, shape index: {}]
  %s1 = inlined_call_operand.vmem [shape: f32[16,32], index: 1, kind: input, shape index: {}]
  %s2 = inlined_call_operand.hbm [shape: f32[16,32], index: 2, kind: input, shape index: {}]
  %s3 = inlined_call_operand.vmem [shape: f32[2,1,8], index: 3, kind: output, shape index: {}]
  %s4 = sld [smem:[#allocation0]]
  $region49: #{kl_loss_forward.1} parent=0
    _
  %s6 = ssub.s32 1, %s4
  %s7 = scalar_select 0, %s6, %s4
  %8 = sst [smem:[#allocation2]] %s0
  $region1: #{kl_loss_forward.1} parent=0
    #allocation3 [shape = 'u8[8192]{0}', space=vmem, size = 0x2000, scoped, tag = 'input window, operand 2, single buffered']
    #allocation4 [shape = 's32[2]{0}', space=sflag, size = 0x8, scoped, tag = 'scoped memory for kl_loss_forward.1']
    %9 = vsyncpa [#allocation4], 0
    loop: start=0, step=1, limit=4
    $region2: #{kl_loss_forward.1} parent=1 // loop_pre_header
      _
    $region3: #{kl_loss_forward.1} parent=1 // loop_header
      %s11 = sphi 0, %s15
      %p12 = scmp.ge.s32.totalorder %s11, 4
      %s19 = sphi 0, %s19
      %s21 = sphi 0, %s19
      %s22 = sphi 0, %s21
      %s36 = sphi 0, %s22
      %s42 = sphi 0, %s44
      %s45 = sphi 0, %s42
      %s46 = sphi 0, %s45
      %s62 = sphi 0, %s46
      %s66 = sphi 0, %s66
      %s68 = sphi 0, %s66
      %s69 = sphi 0, %s68
      %s83 = sphi 0, %s69
      %s89 = sphi 0, %s91
      %s92 = sphi 0, %s89
      %s93 = sphi 0, %s92
      %s109 = sphi 0, %s93
    $region4: #{kl_loss_forward.1} parent=1 // loop_header_branch
      %14 = sbr.rel (%p12) target = $region8
    $region5: #{kl_loss_forward.1} parent=1 // loop_body
      %s16 = ssub.s32 %s11, 1
      %s17 = ssub.s32 %s11, 2
      %s18 = sadd.s32 %s11, 1
      %s20 = sadd.s32 %s19, 1
      %p23 = scmp.eq.s32.totalorder %s11, 1
      %p24 = scmp.ne.s32.totalorder %s19, %s21
      %p25 = scmp.eq.s32.totalorder %s11, 0
      %p26 = por %p24, %p25
      %p27 = scmp.ne.s32.totalorder %s19, %s21
      %p28 = scmp.eq.s32.totalorder %s16, 1
      %p29 = por %p27, %p28
      %p30 = scmp.ne.s32.totalorder %s21, %s22
      %p31 = scmp.eq.s32.totalorder %s16, 0
      %p32 = por %p30, %p31
      %p33 = scmp.ne.s32.totalorder %s21, %s22
      %p34 = scmp.eq.s32.totalorder %s17, 1
      %p35 = por %p33, %p34
      %p37 = scmp.ne.s32.totalorder %s22, %s36
      %p38 = scmp.eq.s32.totalorder %s17, 0
      %p39 = por %p37, %p38
      %s40 = ssub.s32 %s11, %s18
      %p41 = scmp.eq.s32.totalorder %s40, 0
      %s43 = sadd.s32 %s42, 1
      %s44 = scalar_select %p41, %s42, %s43
      %p47 = pneg %p41
      %p48 = scmp.eq.s32.totalorder %s11, 1
      %p49 = por %p47, %p48
      %p50 = scmp.ne.s32.totalorder %s42, %s45
      %p51 = scmp.eq.s32.totalorder %s11, 0
      %p52 = por %p50, %p51
      %p53 = scmp.ne.s32.totalorder %s42, %s45
      %p54 = scmp.eq.s32.totalorder %s16, 1
      %p55 = por %p53, %p54
      %p56 = scmp.ne.s32.totalorder %s45, %s46
      %p57 = scmp.eq.s32.totalorder %s16, 0
      %p58 = por %p56, %p57
      %p59 = scmp.ne.s32.totalorder %s45, %s46
      %p60 = scmp.eq.s32.totalorder %s17, 1
      %p61 = por %p59, %p60
      %p63 = scmp.ne.s32.totalorder %s46, %s62
      %p64 = scmp.eq.s32.totalorder %s17, 0
      %p65 = por %p63, %p64
      %s67 = sadd.s32 %s66, 1
      %p70 = scmp.eq.s32.totalorder %s11, 1
      %p71 = scmp.ne.s32.totalorder %s66, %s68
      %p72 = scmp.eq.s32.totalorder %s11, 0
      %p73 = por %p71, %p72
      %p74 = scmp.ne.s32.totalorder %s66, %s68
      %p75 = scmp.eq.s32.totalorder %s16, 1
      %p76 = por %p74, %p75
      %p77 = scmp.ne.s32.totalorder %s68, %s69
      %p78 = scmp.eq.s32.totalorder %s16, 0
      %p79 = por %p77, %p78
      %p80 = scmp.ne.s32.totalorder %s68, %s69
      %p81 = scmp.eq.s32.totalorder %s17, 1
      %p82 = por %p80, %p81
      %p84 = scmp.ne.s32.totalorder %s69, %s83
      %p85 = scmp.eq.s32.totalorder %s17, 0
      %p86 = por %p84, %p85
      %s87 = ssub.s32 %s11, %s18
      %p88 = scmp.eq.s32.totalorder %s87, 0
      %s90 = sadd.s32 %s89, 1
      %s91 = scalar_select %p88, %s89, %s90
      %p94 = pneg %p88
      %p95 = scmp.eq.s32.totalorder %s11, 1
      %p96 = por %p94, %p95
      %p97 = scmp.ne.s32.totalorder %s89, %s92
      %p98 = scmp.eq.s32.totalorder %s11, 0
      %p99 = por %p97, %p98
      %p100 = scmp.ne.s32.totalorder %s89, %s92
      %p101 = scmp.eq.s32.totalorder %s16, 1
      %p102 = por %p100, %p101
      %p103 = scmp.ne.s32.totalorder %s92, %s93
      %p104 = scmp.eq.s32.totalorder %s16, 0
      %p105 = por %p103, %p104
      %p106 = scmp.ne.s32.totalorder %s92, %s93
      %p107 = scmp.eq.s32.totalorder %s17, 1
      %p108 = por %p106, %p107
      %p110 = scmp.ne.s32.totalorder %s93, %s109
      %p111 = scmp.eq.s32.totalorder %s17, 0
      %p112 = por %p110, %p111
      %p113 = scmp.le.s32.totalorder 1, %s11
      %p114 = scmp.lt.s32.totalorder %s11, 3
      %p115 = pnand %p113, %p114
      %p116 = pneg %p115
      // Predicated region
      $region9: #{kl_loss_forward.1} parent=5 // pred_check
        _
      $region10: #{kl_loss_forward.1} parent=5 // pred_check_branch
        %118 = sbr.rel (%p115) target = $region12
      $region11: #{kl_loss_forward.1} parent=5 // pred_region
        %s119 = ssub.s32 %s11, 1
        // Predicated region
        $region13: #{kl_loss_forward.1} parent=11 // pred_check
          %p120 = pneg %p32
        $region14: #{kl_loss_forward.1} parent=11 // pred_check_branch
          %122 = sbr.rel (%p120) target = $region16
        $region15: #{kl_loss_forward.1} parent=11 // pred_region
          _
        $region16: #{kl_loss_forward.1} parent=11 // pred_fallthru
          _
        // Predicated region
        $region17: #{kl_loss_forward.1} parent=11 // pred_check
          %p123 = pneg %p79
        $region18: #{kl_loss_forward.1} parent=11 // pred_check_branch
          %125 = sbr.rel (%p123) target = $region20
        $region19: #{kl_loss_forward.1} parent=11 // pred_region
          %s127 = ssub.s32 256, 256
          %128 = vsyncadd [#allocation4], %s127
          %s129 = sshll.u32 [#allocation3], 4
          %s130 = int_to_ptr.vmem [resolvable:$true] %s129
          %135 = dma.hbm_to_vmem [thread:$0]  %s2, 256, %s130, [#allocation4], 128, 128, 8
        $region20: #{kl_loss_forward.1} parent=11 // pred_fallthru
          _
      $region12: #{kl_loss_forward.1} parent=5 // pred_fallthru
        _
      %p136 = scmp.lt.s32.totalorder %s11, 2
      // Predicated region
      $region21: #{kl_loss_forward.1} parent=5 // pred_check
        %p137 = pneg %p136
      $region22: #{kl_loss_forward.1} parent=5 // pred_check_branch
        %139 = sbr.rel (%p137) target = $region24
      $region23: #{kl_loss_forward.1} parent=5 // pred_region
        // Predicated region
        $region25: #{kl_loss_forward.1} parent=23 // pred_check
          %p140 = pneg %p52
        $region26: #{kl_loss_forward.1} parent=23 // pred_check_branch
          %142 = sbr.rel (%p140) target = $region28
        $region27: #{kl_loss_forward.1} parent=23 // pred_region
          %p143 = scmp.lt.s32.totalorder %s11, 1
          %s144 = scalar_select %p143, %s11, 1
          %s145 = smul.addr %s144, 8
          %s146 = scalar_lea.vmem %s1, %s145
        $region28: #{kl_loss_forward.1} parent=23 // pred_fallthru
          _
      $region24: #{kl_loss_forward.1} parent=5 // pred_fallthru
        _
      %p147 = scmp.le.s32.totalorder 1, %s11
      %p148 = scmp.lt.s32.totalorder %s11, 3
      %p149 = pnand %p147, %p148
      %p150 = pneg %p149
      // Predicated region
      $region29: #{kl_loss_forward.1} parent=5 // pred_check
        _
      $region30: #{kl_loss_forward.1} parent=5 // pred_check_branch
        %152 = sbr.rel (%p149) target = $region32
      $region31: #{kl_loss_forward.1} parent=5 // pred_region
        %s153 = ssub.s32 %s11, 1
        // Predicated region
        $region33: #{kl_loss_forward.1} parent=31 // pred_check
          %p154 = pneg %p79
        $region34: #{kl_loss_forward.1} parent=31 // pred_check_branch
          %156 = sbr.rel (%p154) target = $region36
        $region35: #{kl_loss_forward.1} parent=31 // pred_region
          %157 = dma.done [#allocation4], 256
        $region36: #{kl_loss_forward.1} parent=31 // pred_fallthru
          _
        %p158 = pneg %p32
        %p159 = pneg %p29
        %p160 = scmp.lt.s32.totalorder %s16, 1
        %s161 = scalar_select %p160, %s16, 1
        %s162 = smul.addr %s161, 8
        %s163 = scalar_lea.vmem %s1, %s162
        %p164 = pneg %p58
        %p165 = pneg %p55
        %p166 = pneg %p79
        %p167 = pneg %p76
        %p168 = pneg %p105
        %p169 = pneg %p102
        %p170 = scmp.lt.s32.totalorder %s16, 1
        %s171 = scalar_select %p170, %s16, 1
        %s172 = scalar_lea.vmem %s3, %s171
        %p173 = scmp.lt.s32.totalorder %s16, 1
        %s174 = scalar_select %p173, %s16, 1
        %s175 = smul.addr %s174, 8
        %s176 = scalar_lea.vmem %s1, %s175
        %p177 = scmp.lt.s32.totalorder %s16, 1
        %s178 = scalar_select %p177, %s16, 1
        %s179 = scalar_lea.vmem %s3, %s178
        %v180 = vld [vmem:[#allocation3] sm:$0xff]
        %v181 = vld [vmem:[#allocation3 + $0x8] sm:$0xff]
        %v182 = vld [vmem:[%s176] sm:$0xff]
        %vm183 = vcmask 261120
        %v185 = vsel %vm183, %v180, 0
        %v188 = vsel %vm183, %v181, 0
        %v191 = vsel %vm183, %v182, 0
        %193 = vmatprep.subr.mxu0 0.0
        %194 = vmatpush1.xpose.msra.mxu0 %v191
        %195 = vmatprep.subr.mxu0 0.0
        %196 = vmatpush1.xpose.msra.mxu0 0.0
        %197 = vmatprep.subr.mxu0 0.0
        %198 = vmatpush1.xpose.msra.mxu0 0.0
        %199 = vmatprep.subr.mxu0 0.0
        %200 = vmatpush1.xpose.msra.mxu0 0.0
        %201 = vmatprep.subr.mxu0 0.0
        %202 = vmatpush1.xpose.msra.mxu0 0.0
        %203 = vmatprep.subr.mxu0 0.0
        %204 = vmatpush1.xpose.msra.mxu0 0.0
        %205 = vmatprep.subr.mxu0 0.0
        %206 = vmatpush1.xpose.msra.mxu0 0.0
        %207 = vmatprep.subr.mxu0 0.0
        %208 = vmatpush1.xpose.msra.mxu0 0.0
        %209 = vmatprep.subr.mxu0 0.0
        %210 = vmatpush1.xpose.msra.mxu0 0.0
        %211 = vmatprep.subr.mxu0 0.0
        %212 = vmatpush1.xpose.msra.mxu0 0.0
        %213 = vmatprep.subr.mxu0 0.0
        %214 = vmatpush1.xpose.msra.mxu0 0.0
        %215 = vmatprep.subr.mxu0 0.0
        %216 = vmatpush1.xpose.msra.mxu0 0.0
        %217 = vmatprep.subr.mxu0 0.0
        %218 = vmatpush1.xpose.msra.mxu0 0.0
        %219 = vmatprep.subr.mxu0 0.0
        %220 = vmatpush1.xpose.msra.mxu0 0.0
        %221 = vmatprep.subr.mxu0 0.0
        %222 = vmatpush1.xpose.msra.mxu0 0.0
        %223 = vmatprep.subr.mxu0 0.0
        %224 = vmatpush1.xpose.msra.mxu0 0.0
        %225 = vmatprep.subr.mxu0 0.0
        %226 = vmatpush1.xpose.msra.mxu0 0.0
        %227 = vmatprep.subr.mxu0 0.0
        %228 = vmatpush1.xpose.msra.mxu0 0.0
        %229 = vmatprep.subr.mxu0 0.0
        %230 = vmatpush1.xpose.msra.mxu0 0.0
        %231 = vmatprep.subr.mxu0 0.0
        %232 = vmatpush1.xpose.msra.mxu0 0.0
        %233 = vmatprep.subr.mxu0 0.0
        %234 = vmatpush1.xpose.msra.mxu0 0.0
        %235 = vmatprep.subr.mxu0 0.0
        %236 = vmatpush1.xpose.msra.mxu0 0.0
        %237 = vmatprep.subr.mxu0 0.0
        %238 = vmatpush1.xpose.msra.mxu0 0.0
        %239 = vmatprep.subr.mxu0 0.0
        %240 = vmatpush1.xpose.msra.mxu0 0.0
        %241 = vmatprep.subr.mxu0 0.0
        %242 = vmatpush1.xpose.msra.mxu0 0.0
        %243 = vmatprep.subr.mxu0 0.0
        %244 = vmatpush1.xpose.msra.mxu0 0.0
        %245 = vmatprep.subr.mxu0 0.0
        %246 = vmatpush1.xpose.msra.mxu0 0.0
        %247 = vmatprep.subr.mxu0 0.0
        %248 = vmatpush1.xpose.msra.mxu0 0.0
        %249 = vmatprep.subr.mxu0 0.0
        %250 = vmatpush1.xpose.msra.mxu0 0.0
        %251 = vmatprep.subr.mxu0 0.0
        %252 = vmatpush1.xpose.msra.mxu0 0.0
        %253 = vmatprep.subr.mxu0 0.0
        %254 = vmatpush1.xpose.msra.mxu0 0.0
        %255 = vmatprep.subr.mxu0 0.0
        %256 = vmatpush1.xpose.msra.mxu0 0.0
        %257 = vmatprep.mubr.f32.mxu0 0.0
        %258 = vmatmul.mubr.f32.gmra.mrb[0].mxu0 %v185
        %v259 = vpop.f32.mrb[0].mxu0
        %v260 = vadd.f32 0.0, %v259
        %v261 = vpop.f32.mrb[0].mxu0
        %262 = vmatprep.mubr.f32.mxu0 0.0
        %263 = vmatmul.mubr.f32.gmra.mrb[0].mxu0 %v188
        %v264 = vpop.f32.mrb[0].mxu0
        %v265 = vadd.f32 0.0, %v264
        %v266 = vpop.f32.mrb[0].mxu0
        %267 = vdwg.mxu0
        %vm268 = vcmask 64512
        %v269 = vsel %vm268, %v260, -inf
        %v270 = vsel %vm268, %v265, -inf
        %v271 = vmax.f32 %v269, %v270
        %v272 = vrot.slane %v271, 4
        %v273 = vmax.f32 %v271, %v272
        %v274 = vrot.slane %v273, 2
        %v275 = vmax.f32 %v273, %v274
        %v276 = vrot.slane %v275, 1
        %v277 = vmax.f32 %v275, %v276
        %v278 = vsub.f32 %v260, %v277
        %v279 = vsub.f32 %v265, %v277
        %v280 = vmul.f32 %v278, 1.442695
        %v281 = vpow.pop %v280
        %v282 = vmul.f32 %v279, 1.442695
        %v283 = vpow.pop %v282
        %v284 = vsel %vm268, %v281, 0.0
        %v285 = vsel %vm268, %v283, 0.0
        %v286 = vadd.f32 %v284, %v285
        %v287 = vrot.slane %v286, 4
        %v288 = vadd.f32 %v286, %v287
        %v289 = vrot.slane %v288, 2
        %v290 = vadd.f32 %v288, %v289
        %v291 = vrot.slane %v290, 1
        %v292 = vadd.f32 %v290, %v291
        %v293 = vrcp.pop %v292
        %v294 = vmul.f32 %v281, %v293
        %v295 = vmul.f32 %v283, %v293
        %v296 = vlog2.pop %v292
        %v297 = vmul.f32 %v296, 0.6931472
        %v298 = vsub.f32 %v278, %v297
        %v299 = vsub.f32 %v279, %v297
        %v300 = vlaneseq
        %v301 = vshrl.u32 %v300, 7
        %v302 = vadd.s32 %v301, 8
        %v303 = vcvt.s32.f32 %v301
        %v304 = vcvt.s32.f32 %v302
        %vm305 = vcmp.ge.f32.partialorder %v260, %v277
        %vm306 = vcmp.ge.f32.partialorder %v265, %v277
        %v307 = vsel %vm305, %v303, 16.0
        %v308 = vsel %vm306, %v304, 16.0
        %v309 = vsel %vm268, %v307, inf
        %v310 = vsel %vm268, %v308, inf
        %v311 = vmin.f32 %v309, %v310
        %v312 = vrot.slane %v311, 4
        %v313 = vmin.f32 %v311, %v312
        %v314 = vrot.slane %v313, 2
        %v315 = vmin.f32 %v313, %v314
        %v316 = vrot.slane %v315, 1
        %v317 = vmin.f32 %v315, %v316
        %v318 = vsub.f32 %v303, %v317
        %v319 = vsub.f32 %v304, %v317
        %s320 = sld [smem:[#allocation2]]
        %v321 = vmul.f32 %v318, %v318
        %v322 = vmul.f32 %v319, %v319
        %v323 = vstv %s320
        %v324 = vmul.f32 %v323, %v321
        %v325 = vmul.f32 %v323, %v322
        %v326 = vmul.f32 %v324, 1.442695
        %v327 = vpow.pop %v326
        %v328 = vmul.f32 %v325, 1.442695
        %v329 = vpow.pop %v328
        %v330 = vsel %vm268, %v327, 0.0
        %v331 = vsel %vm268, %v329, 0.0
        %v332 = vadd.f32 %v330, %v331
        %v333 = vrot.slane %v332, 4
        %v334 = vadd.f32 %v332, %v333
        %v335 = vrot.slane %v334, 2
        %v336 = vadd.f32 %v334, %v335
        %v337 = vrot.slane %v336, 1
        %v338 = vadd.f32 %v336, %v337
        %v339 = vrcp.pop %v338
        %v340 = vmul.f32 %v327, %v339
        %v341 = vmul.f32 %v329, %v339
        %v342 = vlog2.pop %v338
        %v343 = vmul.f32 %v342, 0.6931472
        %v344 = vsub.f32 %v324, %v343
        %v345 = vsub.f32 %v325, %v343
        %v346 = vsub.f32 %v340, %v294
        %v347 = vsub.f32 %v341, %v295
        %v348 = vsub.f32 %v344, %v298
        %v349 = vsub.f32 %v345, %v299
        %v350 = vmul.f32 %v346, %v348
        %v351 = vmul.f32 %v347, %v349
        %v352 = vsel %vm268, %v350, 0.0
        %v353 = vsel %vm268, %v351, 0.0
        %v354 = vadd.f32 %v352, %v353
        %v355 = vrot.slane %v354, 4
        %v356 = vadd.f32 %v354, %v355
        %v357 = vrot.slane %v356, 2
        %v358 = vadd.f32 %v356, %v357
        %v359 = vrot.slane %v358, 1
        %v360 = vadd.f32 %v358, %v359
        %vm361 = vcmask 57344
        %362 = vst.msk [vmem:[%s179] sm:$0x1] %vm361, %v360
        %p363 = scmp.lt.s32.totalorder %s16, 1
        %s364 = scalar_select %p363, %s16, 1
        %s365 = scalar_lea.vmem %s3, %s364
        // Predicated region
        $region37: #{kl_loss_forward.1} parent=31 // pred_check
          %p366 = pneg %p102
        $region38: #{kl_loss_forward.1} parent=31 // pred_check_branch
          %368 = sbr.rel (%p366) target = $region40
        $region39: #{kl_loss_forward.1} parent=31 // pred_region
          _
        $region40: #{kl_loss_forward.1} parent=31 // pred_fallthru
          _
      $region32: #{kl_loss_forward.1} parent=5 // pred_fallthru
        _
      %p369 = scmp.le.s32.totalorder 2, %s11
      // Predicated region
      $region41: #{kl_loss_forward.1} parent=5 // pred_check
        %p370 = pneg %p369
      $region42: #{kl_loss_forward.1} parent=5 // pred_check_branch
        %372 = sbr.rel (%p370) target = $region44
      $region43: #{kl_loss_forward.1} parent=5 // pred_region
        %s373 = ssub.s32 %s11, 2
        // Predicated region
        $region45: #{kl_loss_forward.1} parent=43 // pred_check
          %p374 = pneg %p108
        $region46: #{kl_loss_forward.1} parent=43 // pred_check_branch
          %376 = sbr.rel (%p374) target = $region48
        $region47: #{kl_loss_forward.1} parent=43 // pred_region
          %p377 = scmp.lt.s32.totalorder %s17, 1
          %s378 = scalar_select %p377, %s17, 1
          %s379 = scalar_lea.vmem %s3, %s378
        $region48: #{kl_loss_forward.1} parent=43 // pred_fallthru
          _
      $region44: #{kl_loss_forward.1} parent=5 // pred_fallthru
        _
    $region6: #{kl_loss_forward.1} parent=1 // loop_footer
      %s15 = sadd.s32 1, %s11
    $region7: #{kl_loss_forward.1} parent=1 // loop_footer_branch
      %10 = sbr.rel target = $region3
    $region8: #{kl_loss_forward.1} parent=1 // loop_exit
      _
    %380 = vsyncpa [#allocation4], 1
    %s381 = scalar_lea.sflag [#allocation4], 1
    %382 = vsyncpa %s381, 1

</llo_original>
